<compile_context>
chip_gen: v5e
topology: v5e:2x2
jax: 0.10.0
libtpu: 0.0.40
codegen_flags: <defaults>
</compile_context>

<pallas_src>
import jax
import jax.numpy as jnp
from jax import lax
from jax.experimental import pallas as pl
from jax.experimental.pallas import tpu as pltpu

_EPS = 1e-12  # torch.nn.functional.normalize default eps


# ---------------------------------------------------------------------------
# Kernels.  o = (x @ w.T) * (temp/||x||) * (1/||w||), with the inverse norms
# precomputed in the wrapper.
# ---------------------------------------------------------------------------
def _classifier_kernel_fullk(x_ref, w_ref, ix_ref, iw_ref, o_ref):
    # Whole (padded) feature dim in one tile: no K grid axis, no accumulator.
    acc = lax.dot_general(
        x_ref[...], w_ref[...],
        dimension_numbers=(((1,), (1,)), ((), ())),   # x @ w.T, no transpose
        preferred_element_type=jnp.float32)
    o_ref[...] = (acc * ix_ref[...] * iw_ref[...]).astype(o_ref.dtype)


def _classifier_kernel_ktiled(x_ref, w_ref, ix_ref, iw_ref, o_ref, acc_ref):
    k = pl.program_id(2)

    @pl.when(k == 0)
    def _init():
        acc_ref[...] = jnp.zeros_like(acc_ref)

    acc_ref[...] += lax.dot_general(
        x_ref[...], w_ref[...],
        dimension_numbers=(((1,), (1,)), ((), ())),
        preferred_element_type=jnp.float32)

    @pl.when(k == pl.num_programs(2) - 1)
    def _finalize():
        o_ref[...] = (acc_ref[...] * ix_ref[...] * iw_ref[...]).astype(o_ref.dtype)


# ---------------------------------------------------------------------------
# Tiling / wrapper helpers.
# ---------------------------------------------------------------------------
def _round_up(v, m):
    return ((v + m - 1) // m) * m


def _cdiv(a, b):
    return -(-a // b)


def _halve_lane(v):
    return max(128, (v // 2) // 128 * 128)


def _vmem_capacity_bytes():
    try:
        cap = getattr(pltpu.get_tpu_info(), "vmem_capacity_bytes", None)
        if cap:
            return int(cap)
    except Exception:
        pass
    return 64 << 20  # conservative default (v7x per-TensorCore VMEM)


def _choose_tiles(B, C, F, op_bytes, out_bytes, budget):
    """Pick (tm, tn, tk, grid_k) against the VMEM budget.

    Prefers tk == padded F (single K step: no K grid axis / accumulator /
    init-finalize); otherwise the fewest K tiles that fit.
    """
    tm = min(_round_up(B, 8), 256)
    cp = _round_up(C, 128)
    fp = _round_up(F, 128)

    def footprint(tn, tk, k_tiled):
        buf = 2 * (tm + tn) * tk * op_bytes        # double-buffered x & w tiles
        buf += 2 * tm * tn * out_bytes             # double-buffered output tile
        buf += 2 * (tm * 128 + 8 * tn) * 4         # padded inv-norm blocks
        if k_tiled:
            buf += tm * tn * 4                     # resident f32 accumulator
        return buf

    # Lane-dense tn, as large as the budget allows.  When the whole batch fits
    # one i tile, keep >= 2 j tiles so 2-TensorCore chips (v7x) shard the
    # "parallel" axes across both cores (extra grid step is negligible on
    # single-core generations).
    tn = min(cp, 1024)
    if _round_up(B, tm) // tm == 1 and cp > 128:
        while tn > 128 and _cdiv(cp, tn) < 2:
            tn = _halve_lane(tn)
    while tn > 128 and footprint(tn, min(fp, 512), False) > budget:
        tn = _halve_lane(tn)

    if footprint(tn, fp, False) <= budget:
        return tm, tn, fp, 1                       # full-F tile, no K axis

    gk = 2
    while True:
        tk = _round_up(_cdiv(fp, gk), 128)
        if footprint(tn, tk, True) <= budget or tk <= 512:
            return tm, tn, tk, gk
        gk += 1


def stochastic_classifier_forward(x, mu, sigma, temp, stochastic=False, key=None,
                                  operand_dtype=None, vmem_budget_bytes=None):
    """Pallas TPU implementation of StochasticClassifier.forward.

    x:     (B, F) features
    mu:    (C, F) class means
    sigma: (C, F) pre-softplus stddevs
    operand_dtype: optional matmul-operand dtype (e.g. jnp.bfloat16) to halve
        HBM traffic; norms/accumulation stay f32.  None keeps the input dtype.
    vmem_budget_bytes: override the tile-sizing VMEM budget (tests).
    """
    if stochastic:
        # TODO(synk): could fuse the reparameterization in-kernel with
        # pltpu.prng_seed/prng_random_bits to skip this (C, F) HBM round trip,
        # but that changes the RNG stream vs jax.random; kept as XLA glue (it
        # fuses with the norm/pad/cast producers below) so results match the
        # reference exactly.
        assert key is not None, "stochastic=True requires a PRNG key"
        sp = jax.nn.softplus(sigma - 4.0)
        noise = jax.random.normal(key, mu.shape, dtype=mu.dtype)
        weight = sp * noise + mu
    else:
        weight = mu

    B, F = x.shape
    C, Fw = weight.shape
    assert F == Fw

    out_dtype = x.dtype
    op_dtype = jnp.dtype(operand_dtype) if operand_dtype is not None else jnp.dtype(x.dtype)

    # Inverse L2 norms, computed once in f32 (rsqrt(max(ssq, eps^2)) ==
    # 1/max(||v||, eps), matching torch F.normalize).  temp is folded into the
    # x-side scale so the kernel epilogue is just two multiplies.
    xf = x.astype(jnp.float32)
    wf = weight.astype(jnp.float32)
    inv_x = jnp.float32(temp) * lax.rsqrt(
        jnp.maximum(jnp.sum(xf * xf, axis=1, keepdims=True), _EPS * _EPS))    # (B,1)
    inv_w = lax.rsqrt(
        jnp.maximum(jnp.sum(wf * wf, axis=1, keepdims=True), _EPS * _EPS)).T  # (1,C)

    # Generation-aware VMEM budget: ~3/4 of physical (v7x: ~48 MiB of 64 MiB,
    # v5e/v6e: capped at 96 MiB of 128 MiB), with an explicit compiler limit.
    vmem_cap = _vmem_capacity_bytes()
    budget = (vmem_budget_bytes if vmem_budget_bytes is not None
              else min(vmem_cap * 3 // 4, 96 << 20))
    tm, tn, tk, grid_k = _choose_tiles(B, C, F, op_dtype.itemsize,
                                       jnp.dtype(out_dtype).itemsize, budget)

    Bp = _round_up(B, tm)
    Cp = _round_up(C, tn)
    Fp = tk * grid_k

    def pad2(a, rows, cols):
        r, c = a.shape
        return a if (r, c) == (rows, cols) else jnp.pad(a, ((0, rows - r), (0, cols - c)))

    # Zero padding is harmless: padded F contributes 0 to the dot product;
    # padded B/C rows give rows/columns that are sliced off below.  The pads and
    # casts fuse with the norm/reparameterization producers (no-ops when F is
    # already 128-aligned and op_dtype matches the input dtype).
    x_p = pad2(x, Bp, Fp).astype(op_dtype)
    w_p = pad2(weight, Cp, Fp).astype(op_dtype)
    ix_p = pad2(inv_x, Bp, 1)
    iw_p = pad2(inv_w, 1, Cp)

    grid_i, grid_j = Bp // tm, Cp // tn

    if grid_k == 1:
        grid = (grid_i, grid_j)
        in_specs = [
            pl.BlockSpec((tm, Fp), lambda i, j: (i, 0)),   # x tile
            pl.BlockSpec((tn, Fp), lambda i, j: (j, 0)),   # weight tile
            pl.BlockSpec((tm, 1), lambda i, j: (i, 0)),    # temp / ||x||
            pl.BlockSpec((1, tn), lambda i, j: (0, j)),    # 1 / ||w||
        ]
        out_specs = pl.BlockSpec((tm, tn), lambda i, j: (i, j))
        scratch_shapes = ()
        kernel = _classifier_kernel_fullk
        dim_sem = ("parallel", "parallel")
    else:
        grid = (grid_i, grid_j, grid_k)
        in_specs = [
            pl.BlockSpec((tm, tk), lambda i, j, k: (i, k)),
            pl.BlockSpec((tn, tk), lambda i, j, k: (j, k)),
            pl.BlockSpec((tm, 1), lambda i, j, k: (i, 0)),
            pl.BlockSpec((1, tn), lambda i, j, k: (0, j)),
        ]
        out_specs = pl.BlockSpec((tm, tn), lambda i, j, k: (i, j))
        scratch_shapes = (pltpu.VMEM((tm, tn), jnp.float32),)
        kernel = _classifier_kernel_ktiled
        dim_sem = ("parallel", "parallel", "arbitrary")

    est_footprint = (2 * (tm + tn) * tk * op_dtype.itemsize
                     + 2 * tm * tn * jnp.dtype(out_dtype).itemsize
                     + 2 * (tm * 128 + 8 * tn) * 4
                     + (tm * tn * 4 if grid_k > 1 else 0))
    vmem_limit = int(min(vmem_cap, max(32 << 20, est_footprint + (8 << 20))))

    out = pl.pallas_call(
        kernel,
        out_shape=jax.ShapeDtypeStruct((Bp, Cp), out_dtype),
        grid_spec=pltpu.PrefetchScalarGridSpec(
            num_scalar_prefetch=0,
            grid=grid,
            in_specs=in_specs,
            out_specs=out_specs,
            scratch_shapes=scratch_shapes,
        ),
        compiler_params=pltpu.CompilerParams(
            dimension_semantics=dim_sem,
            vmem_limit_bytes=vmem_limit),
    )(x_p, w_p, ix_p, iw_p)

    return out[:B, :C]


def _reference_forward(x, mu, sigma, temp, stochastic=False, key=None):
    """Pure-JAX reference mirroring the PyTorch module."""
    if stochastic:
        sp = jax.nn.softplus(sigma - 4.0)
        noise = jax.random.normal(key, mu.shape, dtype=mu.dtype)
        weight = sp * noise + mu
    else:
        weight = mu
    weight = weight / jnp.maximum(
        jnp.linalg.norm(weight, axis=1, keepdims=True), _EPS)
    xn = x / jnp.maximum(jnp.linalg.norm(x, axis=1, keepdims=True), _EPS)
    return (xn @ weight.T) * temp


if __name__ == "__main__":
    temp = 16.0
    key = jax.random.PRNGKey(0)
    k_mu, k_x, k_noise, k_mu2, k_x2 = jax.random.split(key, 5)

    # ---- Small shapes consistent with the module (single tile, full-F path) ----
    num_features, num_classes, batch = 32, 16, 8
    mu = 0.01 * jax.random.normal(
        k_mu, (num_classes, num_features), dtype=jnp.float32)
    sigma = jnp.zeros((num_classes, num_features), dtype=jnp.float32)
    x = jax.random.normal(k_x, (batch, num_features), dtype=jnp.float32)

    out = jax.block_until_ready(
        stochastic_classifier_forward(x, mu, sigma, temp, stochastic=False))
    ref = _reference_forward(x, mu, sigma, temp, stochastic=False)
    assert out.shape == (batch, num_classes)
    assert jnp.allclose(out, ref, atol=1e-4, rtol=1e-4)

    # ---- Stochastic path (same key in wrapper and reference -> identical weight) ----
    out_s = jax.block_until_ready(
        stochastic_classifier_forward(x, mu, sigma, temp, stochastic=True, key=k_noise))
    ref_s = _reference_forward(x, mu, sigma, temp, stochastic=True, key=k_noise)
    assert jnp.allclose(out_s, ref_s, atol=1e-4, rtol=1e-4)

    # ---- Larger shapes: multiple j tiles, padding on C, full-F single K step ----
    F2, C2, B2 = 640, 272, 24
    mu2 = 0.01 * jax.random.normal(k_mu2, (C2, F2), dtype=jnp.float32)
    sigma2 = jnp.zeros((C2, F2), dtype=jnp.float32)
    x2 = jax.random.normal(k_x2, (B2, F2), dtype=jnp.float32)
    ref2 = _reference_forward(x2, mu2, sigma2, temp, stochastic=False)

    out2 = jax.block_until_ready(
        stochastic_classifier_forward(x2, mu2, sigma2, temp, stochastic=False))
    assert out2.shape == (B2, C2)
    assert jnp.allclose(out2, ref2, atol=1e-4, rtol=1e-4)

    # ---- Force the K-tiled fallback (tiny artificial VMEM budget) ----
    out3 = jax.block_until_ready(
        stochastic_classifier_forward(x2, mu2, sigma2, temp,
                                      vmem_budget_bytes=512 * 1024))
    assert jnp.allclose(out3, ref2, atol=1e-4, rtol=1e-4)

    # ---- bf16 matmul operands (halves HBM traffic; f32 norms/accumulation) ----
    out_bf = jax.block_until_ready(
        stochastic_classifier_forward(x2, mu2, sigma2, temp,
                                      operand_dtype=jnp.bfloat16))
    assert jnp.allclose(out_bf, ref2, atol=0.3, rtol=0.05)

    print("KERNEL_OK")
</pallas_src>

<mosaic_0001>
module attributes {stable_mosaic.version = 11 : i64} {
  func.func @_classifier_kernel_fullk(%arg0: i32, %arg1: i32, %arg2: memref<8x128xf32, #tpu.memory_space<vmem>>, %arg3: memref<128x128xf32, #tpu.memory_space<vmem>>, %arg4: memref<8x1xf32, #tpu.memory_space<vmem>>, %arg5: memref<1x128xf32, #tpu.memory_space<vmem>>, %arg6: memref<8x128xf32, #tpu.memory_space<vmem>>) attributes {dimension_semantics = [#tpu.dimension_semantics<parallel>, #tpu.dimension_semantics<parallel>], iteration_bounds = array<i64: 1, 1>, scalar_prefetch = 0 : i64, scratch_operands = 0 : i64, tpu.core_type = #tpu.core_type<tc>, window_params = [{transform_indices = @transform_0, window_bounds = array<i64: 8, 128>}, {transform_indices = @transform_1, window_bounds = array<i64: 128, 128>}, {transform_indices = @transform_2, window_bounds = array<i64: 8, 1>}, {transform_indices = @transform_3, window_bounds = array<i64: 1, 128>}, {transform_indices = @transform_4, window_bounds = array<i64: 8, 128>}]} {
    %c0 = arith.constant 0 : index
    %c0_0 = arith.constant 0 : index
    %0 = vector.load %arg2[%c0, %c0_0] : memref<8x128xf32, #tpu.memory_space<vmem>>, vector<8x128xf32>
    %c0_1 = arith.constant 0 : index
    %c0_2 = arith.constant 0 : index
    %1 = vector.load %arg3[%c0_1, %c0_2] : memref<128x128xf32, #tpu.memory_space<vmem>>, vector<128x128xf32>
    %cst = arith.constant dense<0.000000e+00> : vector<8x128xf32>
    %2 = tpu.matmul %0, %1, %cst {dimension_numbers = #tpu.dot_dimension_numbers<[1], [1], [0], [0], [0, 0, 1, 0], [], []>} : vector<8x128xf32>, vector<128x128xf32>, vector<8x128xf32> -> vector<8x128xf32>
    %c0_3 = arith.constant 0 : index
    %c0_4 = arith.constant 0 : index
    %3 = vector.load %arg4[%c0_3, %c0_4] : memref<8x1xf32, #tpu.memory_space<vmem>>, vector<8x1xf32>
    %4 = vector.broadcast %3 : vector<8x1xf32> to vector<8x128xf32>
    %5 = arith.mulf %2, %4 : vector<8x128xf32>
    %c0_5 = arith.constant 0 : index
    %c0_6 = arith.constant 0 : index
    %6 = vector.load %arg5[%c0_5, %c0_6] : memref<1x128xf32, #tpu.memory_space<vmem>>, vector<1x128xf32>
    %7 = vector.broadcast %6 : vector<1x128xf32> to vector<8x128xf32>
    %8 = arith.mulf %5, %7 : vector<8x128xf32>
    %c0_7 = arith.constant 0 : index
    %c0_8 = arith.constant 0 : index
    %9 = vector.load %arg6[%c0_7, %c0_8] : memref<8x128xf32, #tpu.memory_space<vmem>>, vector<8x128xf32>
    tpu.vector_store %arg6[%c0_7, %c0_8], %8 {strides = array<i32>} : memref<8x128xf32, #tpu.memory_space<vmem>>, vector<8x128xf32>,
    return
  }
  func.func @transform_0(%arg0: i32, %arg1: i32) -> (i32, i32) {
    %c0_i32 = arith.constant 0 : i32
    %c0_i32_0 = arith.constant 0 : i32
    return %arg0, %c0_i32 : i32, i32
  }
  func.func @transform_1(%arg0: i32, %arg1: i32) -> (i32, i32) {
    %c0_i32 = arith.constant 0 : i32
    %c0_i32_0 = arith.constant 0 : i32
    return %arg1, %c0_i32 : i32, i32
  }
  func.func @transform_2(%arg0: i32, %arg1: i32) -> (i32, i32) {
    %c0_i32 = arith.constant 0 : i32
    %c0_i32_0 = arith.constant 0 : i32
    return %arg0, %c0_i32 : i32, i32
  }
  func.func @transform_3(%arg0: i32, %arg1: i32) -> (i32, i32) {
    %c0_i32 = arith.constant 0 : i32
    %c0_i32_0 = arith.constant 0 : i32
    return %c0_i32, %arg1 : i32, i32
  }
  func.func @transform_4(%arg0: i32, %arg1: i32) -> (i32, i32) {
    %c0_i32 = arith.constant 0 : i32
    return %arg0, %arg1 : i32, i32
  }
}

</mosaic_0001>

<llo_original>
// kernel: tpu_custom_call.1
$region0: #{tpu_custom_call.1}
  #allocation0 [shape = 'u32[]', space=smem, size = 0x4, offset = 0x4, fixed_abs, tag = 'smem constant byte address 0x4 - core index']
  #allocation1 [shape = 'u32[72,128]{1,0:T(1,128)}', space=vmem, size = 0x9000, scoped, tag = 'internal scratch']
  %s0 = inlined_call_operand.vmem [shape: f32[8,128], index: 0, kind: input, shape index: {}]
  %s1 = inlined_call_operand.hbm [shape: f32[128,128], index: 1, kind: input, shape index: {}]
  %s2 = inlined_call_operand.vmem [shape: f32[8,1], index: 2, kind: input, shape index: {}]
  %s3 = inlined_call_operand.vmem [shape: f32[1,128], index: 3, kind: input, shape index: {}]
  %s4 = inlined_call_operand.hbm [shape: f32[8,128], index: 4, kind: output, shape index: {}]
  %s5 = sld [smem:[#allocation0]]
  $region30: #{tpu_custom_call.1} parent=0
    _
  %s7 = ssub.s32 1, %s5
  %s8 = scalar_select 0, %s7, %s5
  $region1: #{tpu_custom_call.1} parent=0
    #allocation2 [shape = 'u8[65536]{0}', space=vmem, size = 0x10000, scoped, tag = 'input window, operand 1, single buffered']
    #allocation3 [shape = 's32[1]{0}', space=sflag, size = 0x4, scoped, tag = 'scoped memory for tpu_custom_call.1']
    #allocation4 [shape = 's32[1]{0}', space=sflag, size = 0x4, scoped, tag = 'scoped memory for tpu_custom_call.1']
    #allocation5 [shape = 'u8[4096]{0}', space=vmem, size = 0x1000, scoped, tag = 'output window, operand 0, single buffered']
    %9 = vsyncpa [#allocation3], 0
    %10 = vsyncpa [#allocation4], 0
    // Predicated region
    $region2: #{tpu_custom_call.1} parent=1 // pred_check
      _
    $region3: #{tpu_custom_call.1} parent=1 // pred_check_branch
      %12 = sbr.rel (0) target = $region5
    $region4: #{tpu_custom_call.1} parent=1 // pred_region
      _
    $region5: #{tpu_custom_call.1} parent=1 // pred_fallthru
      _
    // Predicated region
    $region6: #{tpu_custom_call.1} parent=1 // pred_check
      _
    $region7: #{tpu_custom_call.1} parent=1 // pred_check_branch
      %14 = sbr.rel (0) target = $region9
    $region8: #{tpu_custom_call.1} parent=1 // pred_region
      %16 = vsyncadd [#allocation3], 0
      %s17 = sshll.u32 %s1, 4
      %s18 = int_to_ptr.hbm [resolvable:$true] %s17
      %s19 = sshll.u32 [#allocation2], 4
      %s20 = int_to_ptr.vmem [resolvable:$true] %s19
      %25 = dma.hbm_to_vmem [thread:$0]  %s18, 2048, %s20, [#allocation3], 128, 128, 8
    $region9: #{tpu_custom_call.1} parent=1 // pred_fallthru
      _
    // Predicated region
    $region10: #{tpu_custom_call.1} parent=1 // pred_check
      _
    $region11: #{tpu_custom_call.1} parent=1 // pred_check_branch
      %27 = sbr.rel (0) target = $region13
    $region12: #{tpu_custom_call.1} parent=1 // pred_region
      _
    $region13: #{tpu_custom_call.1} parent=1 // pred_fallthru
      _
    // Predicated region
    $region14: #{tpu_custom_call.1} parent=1 // pred_check
      _
    $region15: #{tpu_custom_call.1} parent=1 // pred_check_branch
      %29 = sbr.rel (0) target = $region17
    $region16: #{tpu_custom_call.1} parent=1 // pred_region
      _
    $region17: #{tpu_custom_call.1} parent=1 // pred_fallthru
      _
    // Predicated region
    $region18: #{tpu_custom_call.1} parent=1 // pred_check
      _
    $region19: #{tpu_custom_call.1} parent=1 // pred_check_branch
      %31 = sbr.rel (0) target = $region21
    $region20: #{tpu_custom_call.1} parent=1 // pred_region
      %33 = dma.done [#allocation3], 2048
    $region21: #{tpu_custom_call.1} parent=1 // pred_fallthru
      _
    %v34 = vld [vmem:[%s0] sm:$0xff]
    %v35 = vld [vmem:[#allocation2] sm:$0xff]
    %v36 = vld [vmem:[#allocation2 + $0x8] sm:$0xff]
    %v37 = vld [vmem:[#allocation2 + $0x10] sm:$0xff]
    %v38 = vld [vmem:[#allocation2 + $0x18] sm:$0xff]
    %v39 = vld [vmem:[#allocation2 + $0x20] sm:$0xff]
    %v40 = vld [vmem:[#allocation2 + $0x28] sm:$0xff]
    %v41 = vld [vmem:[#allocation2 + $0x30] sm:$0xff]
    %v42 = vld [vmem:[#allocation2 + $0x38] sm:$0xff]
    %v43 = vld [vmem:[#allocation2 + $0x40] sm:$0xff]
    %v44 = vld [vmem:[#allocation2 + $0x48] sm:$0xff]
    %v45 = vld [vmem:[#allocation2 + $0x50] sm:$0xff]
    %v46 = vld [vmem:[#allocation2 + $0x58] sm:$0xff]
    %v47 = vld [vmem:[#allocation2 + $0x60] sm:$0xff]
    %v48 = vld [vmem:[#allocation2 + $0x68] sm:$0xff]
    %v49 = vld [vmem:[#allocation2 + $0x70] sm:$0xff]
    %v50 = vld [vmem:[#allocation2 + $0x78] sm:$0xff]
    %51 = vmatpush.xpose.msra.mxu0 %v50
    %52 = vmatpush.xpose.msra.mxu0 %v49
    %53 = vmatpush.xpose.msra.mxu0 %v48
    %54 = vmatpush.xpose.msra.mxu0 %v47
    %55 = vmatpush.xpose.msra.mxu0 %v46
    %56 = vmatpush.xpose.msra.mxu0 %v45
    %57 = vmatpush.xpose.msra.mxu0 %v44
    %58 = vmatpush.xpose.msra.mxu0 %v43
    %59 = vmatpush.xpose.msra.mxu0 %v42
    %60 = vmatpush.xpose.msra.mxu0 %v41
    %61 = vmatpush.xpose.msra.mxu0 %v40
    %62 = vmatpush.xpose.msra.mxu0 %v39
    %63 = vmatpush.xpose.msra.mxu0 %v38
    %64 = vmatpush.xpose.msra.mxu0 %v37
    %65 = vmatpush.xpose.msra.mxu0 %v36
    %66 = vmatpush.xpose.msra.mxu0 %v35
    %67 = vmatmul.f32.gmra.mxu0 %v34
    %v68 = vpop.f32.mrf.mxu0
    %v69 = vadd.f32 0.0, %v68
    %70 = vdwg.mxu0
    %v71 = vld [vmem:[%s2] sm:$0xff]
    %73 = vset.pattern.permute.xlu0 0
    %74 = vperm.xlu0 %73, %v71
    %v75 = vpop.permute.xlu0 %74
    %v77 = vmul.f32 %v69, %v75
    %v78 = vld [vmem:[%s3] sm:$0x1]
    %v80 = vperm.slane %v78, 0
    %v82 = vmul.f32 %v77, %v80
    %83 = vst [vmem:[#allocation5] sm:$0xff] %v82
    // Predicated region
    $region22: #{tpu_custom_call.1} parent=1 // pred_check
      _
    $region23: #{tpu_custom_call.1} parent=1 // pred_check_branch
      %85 = sbr.rel (0) target = $region25
    $region24: #{tpu_custom_call.1} parent=1 // pred_region
      %87 = vsyncadd [#allocation4], 0
      %s89 = sshll.u32 [#allocation5], 4
      %s90 = int_to_ptr.vmem [resolvable:$true] %s89
      %s91 = sshll.u32 %s4, 4
      %s92 = int_to_ptr.hbm [resolvable:$true] %s91
      %94 = dma.vmem_to_hbm [thread:$0]  %s90, 128, %s92, [#allocation4]
    $region25: #{tpu_custom_call.1} parent=1 // pred_fallthru
      _
    // Predicated region
    $region26: #{tpu_custom_call.1} parent=1 // pred_check
      _
    $region27: #{tpu_custom_call.1} parent=1 // pred_check_branch
      %96 = sbr.rel (0) target = $region29
    $region28: #{tpu_custom_call.1} parent=1 // pred_region
      %98 = dma.done [#allocation4], 128
    $region29: #{tpu_custom_call.1} parent=1 // pred_fallthru
      _
    %99 = vsyncpa [#allocation3], 1
    %100 = vsyncpa [#allocation4], 1

</llo_original>
